<compile_context>
chip_gen: v7x
topology: tpu7x:2x2x1
jax: 0.10.0
libtpu: 0.0.40
codegen_flags: <defaults>
</compile_context>

<pallas_src>
import functools

import jax
import jax.numpy as jnp
from jax.experimental import pallas as pl
from jax.experimental.pallas import tpu as pltpu

EPS = 1e-5          # PyTorch GroupNorm default eps
EXPANSION = 4


# ---------------------------------------------------------------------------
# In-kernel helpers
# ---------------------------------------------------------------------------

def _gn(y):
    """GroupNorm(affine=False) over a full (channels, spatial) f32 tile.

    One grid cell holds exactly one (sample, group), so normalising over the
    whole tile is exactly nn.GroupNorm's per-(sample, group) statistic.
    """
    cnt = y.shape[0] * y.shape[1]
    s = jnp.sum(y, axis=-1, keepdims=True)              # lane reduce
    mean = jnp.sum(s, axis=0, keepdims=True) / cnt      # sublane reduce
    c = y - mean
    s2 = jnp.sum(c * c, axis=-1, keepdims=True)
    var = jnp.sum(s2, axis=0, keepdims=True) / cnt
    return c * jax.lax.rsqrt(var + EPS)


def _subsample(a, H, W, stride):
    """Exact stride-s subsample of a flat (C, H*W) map -> (C, Ho*Wo).

    Replaces the old (L, Lo) selection matmul (O(L*Lo) FLOPs, ~10 MB of
    transients at 56x56): rows via a sublane-strided slice, columns via a
    tiny (W, Wo) 0/1 selector matmul (no lane gathers).
    """
    if stride == 1:
        return a
    C = a.shape[0]
    Ho = (H - 1) // stride + 1
    Wo = (W - 1) // stride + 1
    a3 = a.reshape(C, H, W)[:, ::stride, :]                      # (C, Ho, W)
    wi = jax.lax.broadcasted_iota(jnp.int32, (W, Wo), 0)
    wo = jax.lax.broadcasted_iota(jnp.int32, (W, Wo), 1)
    colsel = (wi == wo * stride).astype(a.dtype)
    out = jax.lax.dot_general(a3, colsel, (((2,), (0,)), ((), ())),
                              preferred_element_type=jnp.float32)
    return out.astype(a.dtype).reshape(C, Ho * Wo)


# ---------------------------------------------------------------------------
# Fused Bottleneck kernel: one grid cell = one (group, sample)
# ---------------------------------------------------------------------------

def _bottleneck_kernel(x_ref, w1_ref, w2_ref, w3_ref, *rest,
                       H, W, stride, has_proj):
    if has_proj:
        wsc_ref, o_ref = rest
    else:
        o_ref, = rest

    f32 = jnp.float32
    bf16 = jnp.bfloat16
    L = H * W

    x = x_ref[...]                                               # (Cin/G, L) f32

    # ---- stage 1: 1x1 conv (bf16 MXU) + GN + ReLU --------------------------
    y1 = jnp.dot(w1_ref[...], x.astype(bf16), preferred_element_type=f32)
    y1 = jnp.maximum(_gn(y1), 0.0)                               # (Cmid/G, L) f32
    cm = y1.shape[0]

    # ---- stage 2: 3x3 conv (padding=1) as ONE matmul over K = 9*Cmid/G -----
    # Lane-pad y1 with W+1 zeros on each side: every tap becomes a contiguous
    # static slice of the padded row buffer, and only the left/right image
    # edges need masking (top/bottom taps land in the zero pad).
    zpad = jnp.zeros((cm, W + 1), f32)
    y1p = jnp.concatenate([zpad, y1, zpad], axis=1)              # (cm, L+2W+2)

    col = jax.lax.broadcasted_iota(jnp.int32, (1, L), 1) % W     # (1, L) only
    not_left = col >= 1          # output columns with a valid west neighbour
    not_right = col <= W - 2     # output columns with a valid east neighbour

    taps = []
    for kh in range(3):
        for kw in range(3):
            start = (W + 1) + (kh - 1) * W + (kw - 1)
            tap = y1p[:, start:start + L]                        # (cm, L)
            if kw == 0:
                tap = jnp.where(not_left, tap, 0.0)
            elif kw == 2:
                tap = jnp.where(not_right, tap, 0.0)
            taps.append(tap)
    # Stack the 9 taps along the contraction dim -> one big MXU call instead
    # of nine K=Cmid/G matmuls.
    # TODO(synk): on v7x (64 MiB VMEM) a per-kh stack (K = 3*Cmid/G, 3 dots)
    # halves the stacked-tap working set if very large spatial tiles are used.
    tap_stack = jnp.concatenate(taps, axis=0).astype(bf16)       # (9*cm, L)
    acc = jnp.dot(w2_ref[...], tap_stack, preferred_element_type=f32)

    if stride != 1:
        # Strided conv == stride-1 conv subsampled (exact).
        acc = _subsample(acc, H, W, stride)                      # (cm, Lo)
    y2 = jnp.maximum(_gn(acc), 0.0)

    # ---- stage 3: 1x1 conv + GN ---------------------------------------------
    y3 = _gn(jnp.dot(w3_ref[...], y2.astype(bf16), preferred_element_type=f32))

    # ---- shortcut (projection conv + GN, or identity) -----------------------
    if has_proj:
        xs = x if stride == 1 else _subsample(x, H, W, stride)
        sc = _gn(jnp.dot(wsc_ref[...], xs.astype(bf16),
                         preferred_element_type=f32))
    else:
        sc = x   # identity: stride == 1 and Cin == EXPANSION*planes

    o_ref[...] = jnp.maximum(y3 + sc, 0.0).astype(o_ref.dtype)


# ---------------------------------------------------------------------------
# Wrapper: layout plumbing + pallas_call
# ---------------------------------------------------------------------------

def bottleneck_forward(x, params, stride=1, groups=1):
    N, Cin, H, W = x.shape
    w1, w2, w3 = params["conv1"], params["conv2"], params["conv3"]
    planes = w1.shape[0]
    cout = w3.shape[0]                       # EXPANSION * planes
    G = groups
    ci1 = Cin // G
    cm = planes // G                         # per-group mid channels
    co3 = cout // G
    has_proj = "shortcut" in params

    L = H * W
    Ho = (H - 1) // stride + 1
    Wo = (W - 1) // stride + 1
    Lo = Ho * Wo
    bf16 = jnp.bfloat16

    # Layout plumbing (wrapper-side, tiny): NCHW -> (N, C, H*W) so the lane
    # dim is H*W; per-group weights; conv2 flattened so its 9 taps sit along
    # the contraction dim; all weights cast to bf16 once.
    xf = x.reshape(N, Cin, L)
    w1r = w1.reshape(G, cm, ci1).astype(bf16)
    w2r = (w2.reshape(G, cm, cm, 3, 3)
             .transpose(0, 1, 3, 4, 2)                  # (G, cm, 3, 3, cm_in)
             .reshape(G, cm, 9 * cm).astype(bf16))
    w3r = w3.reshape(G, co3, cm).astype(bf16)

    args = [xf, w1r, w2r, w3r]
    in_specs = [
        pl.BlockSpec((None, ci1, L), lambda g, n: (n, g, 0)),
        # Weight block indices are constant along the inner (batch) grid axis
        # -> Pallas skips the re-DMA for every sample after the first.
        pl.BlockSpec((None, cm, ci1), lambda g, n: (g, 0, 0)),
        pl.BlockSpec((None, cm, 9 * cm), lambda g, n: (g, 0, 0)),
        pl.BlockSpec((None, co3, cm), lambda g, n: (g, 0, 0)),
    ]
    if has_proj:
        wscr = params["shortcut"].reshape(G, co3, ci1).astype(bf16)
        args.append(wscr)
        in_specs.append(pl.BlockSpec((None, co3, ci1), lambda g, n: (g, 0, 0)))

    kernel = functools.partial(_bottleneck_kernel, H=H, W=W, stride=stride,
                               has_proj=has_proj)

    # Per-cell VMEM budget: double-buffered x/out blocks + weights + in-kernel
    # activation working set (y1, padded y1, 9-tap stack, acc, ...), with a
    # 2x safety factor, clamped so it fits every generation (v7x: 64 MiB).
    act = cm * L * 4
    w_bytes = (cm * ci1 + cm * 9 * cm + co3 * cm
               + (co3 * ci1 if has_proj else 0)) * 2
    est = 2 * (ci1 * L * 4 + co3 * Lo * 4) + 2 * w_bytes + 16 * act
    vmem_limit = int(min(max(2 * est, 32 * 1024 * 1024), 48 * 1024 * 1024))

    out = pl.pallas_call(
        kernel,
        out_shape=jax.ShapeDtypeStruct((N, cout, Lo), jnp.float32),
        grid=(G, N),
        in_specs=in_specs,
        out_specs=pl.BlockSpec((None, co3, Lo), lambda g, n: (n, g, 0)),
        compiler_params=pltpu.CompilerParams(
            dimension_semantics=("parallel", "parallel"),
            vmem_limit_bytes=vmem_limit),
    )(*args)
    # TODO(synk): for small spatial layers (e.g. 7x7 -> L=49) pad L/Lo up to a
    # multiple of 128 for lane-dense stores and slice the padding off here.
    return out.reshape(N, cout, Ho, Wo)


# ---------------------------------------------------------------------------
# Parameter init (matches the PyTorch module's weight shapes)
# ---------------------------------------------------------------------------

def init_bottleneck_params(key, in_planes, planes, stride=1, groups=1):
    k1, k2, k3, k4 = jax.random.split(key, 4)
    params = {
        "conv1": 0.1 * jax.random.normal(
            k1, (planes, in_planes // groups, 1, 1), jnp.float32),
        "conv2": 0.1 * jax.random.normal(
            k2, (planes, planes // groups, 3, 3), jnp.float32),
        "conv3": 0.1 * jax.random.normal(
            k3, (EXPANSION * planes, planes // groups, 1, 1), jnp.float32),
    }
    if stride != 1 or in_planes != EXPANSION * planes:
        params["shortcut"] = 0.1 * jax.random.normal(
            k4, (EXPANSION * planes, in_planes // groups, 1, 1), jnp.float32)
    return params


# ---------------------------------------------------------------------------
# Pure-JAX reference (correctness check only; f32 everywhere)
# ---------------------------------------------------------------------------

def _ref_gn(x, groups):
    N, C, H, W = x.shape
    xr = x.reshape(N, groups, -1)
    m = xr.mean(-1, keepdims=True)
    v = ((xr - m) ** 2).mean(-1, keepdims=True)
    return ((xr - m) / jnp.sqrt(v + EPS)).reshape(N, C, H, W)


def _ref_conv(x, w, stride, pad, groups):
    return jax.lax.conv_general_dilated(
        x, w, (stride, stride), [(pad, pad), (pad, pad)],
        feature_group_count=groups,
        dimension_numbers=("NCHW", "OIHW", "NCHW"))


def bottleneck_reference(x, params, stride=1, groups=1):
    out = jax.nn.relu(_ref_gn(_ref_conv(x, params["conv1"], 1, 0, groups), groups))
    out = jax.nn.relu(_ref_gn(_ref_conv(out, params["conv2"], stride, 1, groups), groups))
    out = _ref_gn(_ref_conv(out, params["conv3"], 1, 0, groups), groups)
    if "shortcut" in params:
        sc = _ref_gn(_ref_conv(x, params["shortcut"], stride, 0, groups), groups)
    else:
        sc = x
    return jax.nn.relu(out + sc)


# ---------------------------------------------------------------------------

if __name__ == "__main__":
    key = jax.random.PRNGKey(0)

    configs = [
        # (N, in_planes, planes, H, W, stride, groups)
        (2, 4, 4, 16, 16, 1, 1),       # projection shortcut (Cin != 4*planes)
        (2, 16, 4, 16, 16, 1, 1),      # identity shortcut
        (2, 16, 16, 16, 16, 1, 2),     # grouped convs + grouped GN
    ]
    for idx, (N, in_planes, planes, H, W, stride, groups) in enumerate(configs):
        kx, kp, key = jax.random.split(key, 3)
        x = jax.random.normal(kx, (N, in_planes, H, W), jnp.float32)
        params = init_bottleneck_params(kp, in_planes, planes, stride, groups)

        fwd = jax.jit(functools.partial(bottleneck_forward,
                                        stride=stride, groups=groups))
        out = jax.block_until_ready(fwd(x, params))

        ref = bottleneck_reference(x, params, stride=stride, groups=groups)
        Ho = (H - 1) // stride + 1
        Wo = (W - 1) // stride + 1
        assert out.shape == (N, EXPANSION * planes, Ho, Wo)
        err = float(jnp.max(jnp.abs(out - ref)))
        # bf16 MXU operands (f32 accumulation / f32 GroupNorm) vs. the f32
        # lax.conv reference -> relaxed tolerance.
        assert err < 5e-2, f"config {idx}: max abs err {err}"

    print("KERNEL_OK")
</pallas_src>

<mosaic_0001>
module attributes {stable_mosaic.version = 11 : i64} {
  func.func @_bottleneck_kernel(%arg0: i32, %arg1: i32, %arg2: memref<1x4x256xf32, #tpu.memory_space<vmem>>, %arg3: memref<1x4x4xbf16, #tpu.memory_space<vmem>>, %arg4: memref<1x4x36xbf16, #tpu.memory_space<vmem>>, %arg5: memref<1x16x4xbf16, #tpu.memory_space<vmem>>, %arg6: memref<1x16x4xbf16, #tpu.memory_space<vmem>>, %arg7: memref<1x16x256xf32, #tpu.memory_space<vmem>>) attributes {dimension_semantics = [#tpu.dimension_semantics<parallel>, #tpu.dimension_semantics<parallel>], iteration_bounds = array<i64: 1, 2>, scalar_prefetch = 0 : i64, scratch_operands = 0 : i64, tpu.core_type = #tpu.core_type<tc>, window_params = [{transform_indices = @transform_0, window_bounds = array<i64: 1, 4, 256>}, {transform_indices = @transform_1, window_bounds = array<i64: 1, 4, 4>}, {transform_indices = @transform_2, window_bounds = array<i64: 1, 4, 36>}, {transform_indices = @transform_3, window_bounds = array<i64: 1, 16, 4>}, {transform_indices = @transform_4, window_bounds = array<i64: 1, 16, 4>}, {transform_indices = @transform_5, window_bounds = array<i64: 1, 16, 256>}]} {
    %c0 = arith.constant 0 : index
    %c0_0 = arith.constant 0 : index
    %c0_1 = arith.constant 0 : index
    %0 = vector.load %arg2[%c0, %c0_0, %c0_1] : memref<1x4x256xf32, #tpu.memory_space<vmem>>, vector<1x4x256xf32>
    %1 = vector.shape_cast %0 : vector<1x4x256xf32> to vector<4x256xf32>
    %c0_2 = arith.constant 0 : index
    %c0_3 = arith.constant 0 : index
    %c0_4 = arith.constant 0 : index
    %2 = vector.load %arg3[%c0_2, %c0_3, %c0_4] : memref<1x4x4xbf16, #tpu.memory_space<vmem>>, vector<1x4x4xbf16>
    %3 = vector.shape_cast %2 : vector<1x4x4xbf16> to vector<4x4xbf16>
    %4 = arith.truncf %1 : vector<4x256xf32> to vector<4x256xbf16>
    %cst = arith.constant dense<0.000000e+00> : vector<4x256xf32>
    %5 = tpu.matmul %3, %4, %cst {dimension_numbers = #tpu.dot_dimension_numbers<[1], [0], [0], [1], [0, 0, 1, 1], [], []>} : vector<4x4xbf16>, vector<4x256xbf16>, vector<4x256xf32> -> vector<4x256xf32>
    %cst_5 = arith.constant dense<0.000000e+00> : vector<4xf32>
    %6 = vector.multi_reduction <add>, %5, %cst_5 [1] : vector<4x256xf32> to vector<4xf32>
    %7 = vector.shape_cast %6 : vector<4xf32> to vector<4x1xf32>
    %cst_6 = arith.constant dense<0.000000e+00> : vector<1xf32>
    %8 = vector.multi_reduction <add>, %7, %cst_6 [0] : vector<4x1xf32> to vector<1xf32>
    %9 = vector.shape_cast %8 : vector<1xf32> to vector<1x1xf32>
    %cst_7 = arith.constant 1.024000e+03 : f32
    %10 = vector.broadcast %cst_7 : f32 to vector<1x1xf32>
    %11 = arith.divf %9, %10 : vector<1x1xf32>
    %12 = vector.broadcast %11 : vector<1x1xf32> to vector<4x256xf32>
    %13 = arith.subf %5, %12 : vector<4x256xf32>
    %14 = arith.mulf %13, %13 : vector<4x256xf32>
    %cst_8 = arith.constant dense<0.000000e+00> : vector<4xf32>
    %15 = vector.multi_reduction <add>, %14, %cst_8 [1] : vector<4x256xf32> to vector<4xf32>
    %16 = vector.shape_cast %15 : vector<4xf32> to vector<4x1xf32>
    %cst_9 = arith.constant dense<0.000000e+00> : vector<1xf32>
    %17 = vector.multi_reduction <add>, %16, %cst_9 [0] : vector<4x1xf32> to vector<1xf32>
    %18 = vector.shape_cast %17 : vector<1xf32> to vector<1x1xf32>
    %cst_10 = arith.constant 1.024000e+03 : f32
    %19 = vector.broadcast %cst_10 : f32 to vector<1x1xf32>
    %20 = arith.divf %18, %19 : vector<1x1xf32>
    %cst_11 = arith.constant 9.99999974E-6 : f32
    %21 = vector.broadcast %cst_11 : f32 to vector<1x1xf32>
    %22 = arith.addf %20, %21 : vector<1x1xf32>
    %23 = math.rsqrt %22 : vector<1x1xf32>
    %24 = vector.broadcast %23 : vector<1x1xf32> to vector<4x256xf32>
    %25 = arith.mulf %13, %24 : vector<4x256xf32>
    %cst_12 = arith.constant 0.000000e+00 : f32
    %26 = vector.broadcast %cst_12 : f32 to vector<4x256xf32>
    %27 = arith.maximumf %25, %26 : vector<4x256xf32>
    %cst_13 = arith.constant 0.000000e+00 : f32
    %28 = vector.broadcast %cst_13 : f32 to vector<4x17xf32>
    %29 = tpu.concatenate %28, %27, %28 in 1 : vector<4x17xf32>, vector<4x256xf32>, vector<4x17xf32> -> vector<4x290xf32>
    %30 = tpu.iota {dimensions = array<i32: 1>} : vector<1x256xi32>
    %c16_i32 = arith.constant 16 : i32
    %c0_i32 = arith.constant 0 : i32
    %31 = arith.cmpi eq, %c16_i32, %c0_i32 : i32
    %c1_i32 = arith.constant 1 : i32
    %32 = arith.select %31, %c1_i32, %c16_i32 : i32
    %33 = vector.broadcast %32 : i32 to vector<1x256xi32>
    %34 = arith.remsi %30, %33 : vector<1x256xi32>
    %c0_i32_14 = arith.constant 0 : i32
    %35 = vector.broadcast %c0_i32_14 : i32 to vector<1x256xi32>
    %36 = arith.cmpi ne, %34, %35 : vector<1x256xi32>
    %c0_i32_15 = arith.constant 0 : i32
    %37 = vector.broadcast %c0_i32_15 : i32 to vector<1x256xi32>
    %38 = arith.cmpi slt, %34, %37 : vector<1x256xi32>
    %c0_i32_16 = arith.constant 0 : i32
    %39 = arith.cmpi slt, %32, %c0_i32_16 : i32
    %40 = vector.broadcast %39 : i1 to vector<1x256xi1>
    %41 = vector.broadcast %40 : vector<1x256xi1> to vector<1x256xi1>
    %42 = arith.xori %38, %41 : vector<1x256xi1>
    %43 = arith.andi %42, %36 : vector<1x256xi1>
    %44 = vector.broadcast %32 : i32 to vector<1x256xi32>
    %45 = arith.addi %34, %44 : vector<1x256xi32>
    %46 = arith.select %43, %45, %34 : vector<1x256xi1>, vector<1x256xi32>
    %c1_i32_17 = arith.constant 1 : i32
    %47 = vector.broadcast %c1_i32_17 : i32 to vector<1x256xi32>
    %48 = arith.cmpi sge, %46, %47 : vector<1x256xi32>
    %c14_i32 = arith.constant 14 : i32
    %49 = vector.broadcast %c14_i32 : i32 to vector<1x256xi32>
    %50 = arith.cmpi sle, %46, %49 : vector<1x256xi32>
    %51 = vector.extract_strided_slice %29 {offsets = [0, 0], sizes = [4, 256], strides = [1, 1]} : vector<4x290xf32> to vector<4x256xf32>
    %cst_18 = arith.constant 0.000000e+00 : f32
    %52 = vector.shape_cast %48 : vector<1x256xi1> to vector<1x256xi1>
    %53 = vector.broadcast %52 : vector<1x256xi1> to vector<4x256xi1>
    %54 = vector.broadcast %cst_18 : f32 to vector<4x256xf32>
    %55 = arith.select %53, %51, %54 : vector<4x256xi1>, vector<4x256xf32>
    %56 = vector.extract_strided_slice %29 {offsets = [0, 1], sizes = [4, 256], strides = [1, 1]} : vector<4x290xf32> to vector<4x256xf32>
    %57 = vector.extract_strided_slice %29 {offsets = [0, 2], sizes = [4, 256], strides = [1, 1]} : vector<4x290xf32> to vector<4x256xf32>
    %cst_19 = arith.constant 0.000000e+00 : f32
    %58 = vector.shape_cast %50 : vector<1x256xi1> to vector<1x256xi1>
    %59 = vector.broadcast %58 : vector<1x256xi1> to vector<4x256xi1>
    %60 = vector.broadcast %cst_19 : f32 to vector<4x256xf32>
    %61 = arith.select %59, %57, %60 : vector<4x256xi1>, vector<4x256xf32>
    %62 = vector.extract_strided_slice %29 {offsets = [0, 16], sizes = [4, 256], strides = [1, 1]} : vector<4x290xf32> to vector<4x256xf32>
    %cst_20 = arith.constant 0.000000e+00 : f32
    %63 = vector.shape_cast %48 : vector<1x256xi1> to vector<1x256xi1>
    %64 = vector.broadcast %63 : vector<1x256xi1> to vector<4x256xi1>
    %65 = vector.broadcast %cst_20 : f32 to vector<4x256xf32>
    %66 = arith.select %64, %62, %65 : vector<4x256xi1>, vector<4x256xf32>
    %67 = vector.extract_strided_slice %29 {offsets = [0, 17], sizes = [4, 256], strides = [1, 1]} : vector<4x290xf32> to vector<4x256xf32>
    %68 = vector.extract_strided_slice %29 {offsets = [0, 18], sizes = [4, 256], strides = [1, 1]} : vector<4x290xf32> to vector<4x256xf32>
    %cst_21 = arith.constant 0.000000e+00 : f32
    %69 = vector.shape_cast %50 : vector<1x256xi1> to vector<1x256xi1>
    %70 = vector.broadcast %69 : vector<1x256xi1> to vector<4x256xi1>
    %71 = vector.broadcast %cst_21 : f32 to vector<4x256xf32>
    %72 = arith.select %70, %68, %71 : vector<4x256xi1>, vector<4x256xf32>
    %73 = vector.extract_strided_slice %29 {offsets = [0, 32], sizes = [4, 256], strides = [1, 1]} : vector<4x290xf32> to vector<4x256xf32>
    %cst_22 = arith.constant 0.000000e+00 : f32
    %74 = vector.shape_cast %48 : vector<1x256xi1> to vector<1x256xi1>
    %75 = vector.broadcast %74 : vector<1x256xi1> to vector<4x256xi1>
    %76 = vector.broadcast %cst_22 : f32 to vector<4x256xf32>
    %77 = arith.select %75, %73, %76 : vector<4x256xi1>, vector<4x256xf32>
    %78 = vector.extract_strided_slice %29 {offsets = [0, 33], sizes = [4, 256], strides = [1, 1]} : vector<4x290xf32> to vector<4x256xf32>
    %79 = vector.extract_strided_slice %29 {offsets = [0, 34], sizes = [4, 256], strides = [1, 1]} : vector<4x290xf32> to vector<4x256xf32>
    %cst_23 = arith.constant 0.000000e+00 : f32
    %80 = vector.shape_cast %50 : vector<1x256xi1> to vector<1x256xi1>
    %81 = vector.broadcast %80 : vector<1x256xi1> to vector<4x256xi1>
    %82 = vector.broadcast %cst_23 : f32 to vector<4x256xf32>
    %83 = arith.select %81, %79, %82 : vector<4x256xi1>, vector<4x256xf32>
    %84 = tpu.concatenate %55, %56, %61, %66, %67, %72, %77, %78, %83 in 0 : vector<4x256xf32>, vector<4x256xf32>, vector<4x256xf32>, vector<4x256xf32>, vector<4x256xf32>, vector<4x256xf32>, vector<4x256xf32>, vector<4x256xf32>, vector<4x256xf32> -> vector<36x256xf32>
    %85 = arith.truncf %84 : vector<36x256xf32> to vector<36x256xbf16>
    %c0_24 = arith.constant 0 : index
    %c0_25 = arith.constant 0 : index
    %c0_26 = arith.constant 0 : index
    %86 = vector.load %arg4[%c0_24, %c0_25, %c0_26] : memref<1x4x36xbf16, #tpu.memory_space<vmem>>, vector<1x4x36xbf16>
    %87 = vector.shape_cast %86 : vector<1x4x36xbf16> to vector<4x36xbf16>
    %cst_27 = arith.constant dense<0.000000e+00> : vector<4x256xf32>
    %88 = tpu.matmul %87, %85, %cst_27 {dimension_numbers = #tpu.dot_dimension_numbers<[1], [0], [0], [1], [0, 0, 1, 1], [], []>} : vector<4x36xbf16>, vector<36x256xbf16>, vector<4x256xf32> -> vector<4x256xf32>
    %cst_28 = arith.constant dense<0.000000e+00> : vector<4xf32>
    %89 = vector.multi_reduction <add>, %88, %cst_28 [1] : vector<4x256xf32> to vector<4xf32>
    %90 = vector.shape_cast %89 : vector<4xf32> to vector<4x1xf32>
    %cst_29 = arith.constant dense<0.000000e+00> : vector<1xf32>
    %91 = vector.multi_reduction <add>, %90, %cst_29 [0] : vector<4x1xf32> to vector<1xf32>
    %92 = vector.shape_cast %91 : vector<1xf32> to vector<1x1xf32>
    %cst_30 = arith.constant 1.024000e+03 : f32
    %93 = vector.broadcast %cst_30 : f32 to vector<1x1xf32>
    %94 = arith.divf %92, %93 : vector<1x1xf32>
    %95 = vector.broadcast %94 : vector<1x1xf32> to vector<4x256xf32>
    %96 = arith.subf %88, %95 : vector<4x256xf32>
    %97 = arith.mulf %96, %96 : vector<4x256xf32>
    %cst_31 = arith.constant dense<0.000000e+00> : vector<4xf32>
    %98 = vector.multi_reduction <add>, %97, %cst_31 [1] : vector<4x256xf32> to vector<4xf32>
    %99 = vector.shape_cast %98 : vector<4xf32> to vector<4x1xf32>
    %cst_32 = arith.constant dense<0.000000e+00> : vector<1xf32>
    %100 = vector.multi_reduction <add>, %99, %cst_32 [0] : vector<4x1xf32> to vector<1xf32>
    %101 = vector.shape_cast %100 : vector<1xf32> to vector<1x1xf32>
    %cst_33 = arith.constant 1.024000e+03 : f32
    %102 = vector.broadcast %cst_33 : f32 to vector<1x1xf32>
    %103 = arith.divf %101, %102 : vector<1x1xf32>
    %cst_34 = arith.constant 9.99999974E-6 : f32
    %104 = vector.broadcast %cst_34 : f32 to vector<1x1xf32>
    %105 = arith.addf %103, %104 : vector<1x1xf32>
    %106 = math.rsqrt %105 : vector<1x1xf32>
    %107 = vector.broadcast %106 : vector<1x1xf32> to vector<4x256xf32>
    %108 = arith.mulf %96, %107 : vector<4x256xf32>
    %cst_35 = arith.constant 0.000000e+00 : f32
    %109 = vector.broadcast %cst_35 : f32 to vector<4x256xf32>
    %110 = arith.maximumf %108, %109 : vector<4x256xf32>
    %c0_36 = arith.constant 0 : index
    %c0_37 = arith.constant 0 : index
    %c0_38 = arith.constant 0 : index
    %111 = vector.load %arg5[%c0_36, %c0_37, %c0_38] : memref<1x16x4xbf16, #tpu.memory_space<vmem>>, vector<1x16x4xbf16>
    %112 = vector.shape_cast %111 : vector<1x16x4xbf16> to vector<16x4xbf16>
    %113 = arith.truncf %110 : vector<4x256xf32> to vector<4x256xbf16>
    %cst_39 = arith.constant dense<0.000000e+00> : vector<16x256xf32>
    %114 = tpu.matmul %112, %113, %cst_39 {dimension_numbers = #tpu.dot_dimension_numbers<[1], [0], [0], [1], [0, 0, 1, 1], [], []>} : vector<16x4xbf16>, vector<4x256xbf16>, vector<16x256xf32> -> vector<16x256xf32>
    %cst_40 = arith.constant dense<0.000000e+00> : vector<16xf32>
    %115 = vector.multi_reduction <add>, %114, %cst_40 [1] : vector<16x256xf32> to vector<16xf32>
    %116 = vector.shape_cast %115 : vector<16xf32> to vector<16x1xf32>
    %cst_41 = arith.constant dense<0.000000e+00> : vector<1xf32>
    %117 = vector.multi_reduction <add>, %116, %cst_41 [0] : vector<16x1xf32> to vector<1xf32>
    %118 = vector.shape_cast %117 : vector<1xf32> to vector<1x1xf32>
    %cst_42 = arith.constant 4.096000e+03 : f32
    %119 = vector.broadcast %cst_42 : f32 to vector<1x1xf32>
    %120 = arith.divf %118, %119 : vector<1x1xf32>
    %121 = vector.broadcast %120 : vector<1x1xf32> to vector<16x256xf32>
    %122 = arith.subf %114, %121 : vector<16x256xf32>
    %123 = arith.mulf %122, %122 : vector<16x256xf32>
    %cst_43 = arith.constant dense<0.000000e+00> : vector<16xf32>
    %124 = vector.multi_reduction <add>, %123, %cst_43 [1] : vector<16x256xf32> to vector<16xf32>
    %125 = vector.shape_cast %124 : vector<16xf32> to vector<16x1xf32>
    %cst_44 = arith.constant dense<0.000000e+00> : vector<1xf32>
    %126 = vector.multi_reduction <add>, %125, %cst_44 [0] : vector<16x1xf32> to vector<1xf32>
    %127 = vector.shape_cast %126 : vector<1xf32> to vector<1x1xf32>
    %cst_45 = arith.constant 4.096000e+03 : f32
    %128 = vector.broadcast %cst_45 : f32 to vector<1x1xf32>
    %129 = arith.divf %127, %128 : vector<1x1xf32>
    %cst_46 = arith.constant 9.99999974E-6 : f32
    %130 = vector.broadcast %cst_46 : f32 to vector<1x1xf32>
    %131 = arith.addf %129, %130 : vector<1x1xf32>
    %132 = math.rsqrt %131 : vector<1x1xf32>
    %133 = vector.broadcast %132 : vector<1x1xf32> to vector<16x256xf32>
    %134 = arith.mulf %122, %133 : vector<16x256xf32>
    %c0_47 = arith.constant 0 : index
    %c0_48 = arith.constant 0 : index
    %c0_49 = arith.constant 0 : index
    %135 = vector.load %arg6[%c0_47, %c0_48, %c0_49] : memref<1x16x4xbf16, #tpu.memory_space<vmem>>, vector<1x16x4xbf16>
    %136 = vector.shape_cast %135 : vector<1x16x4xbf16> to vector<16x4xbf16>
    %137 = arith.truncf %1 : vector<4x256xf32> to vector<4x256xbf16>
    %cst_50 = arith.constant dense<0.000000e+00> : vector<16x256xf32>
    %138 = tpu.matmul %136, %137, %cst_50 {dimension_numbers = #tpu.dot_dimension_numbers<[1], [0], [0], [1], [0, 0, 1, 1], [], []>} : vector<16x4xbf16>, vector<4x256xbf16>, vector<16x256xf32> -> vector<16x256xf32>
    %cst_51 = arith.constant dense<0.000000e+00> : vector<16xf32>
    %139 = vector.multi_reduction <add>, %138, %cst_51 [1] : vector<16x256xf32> to vector<16xf32>
    %140 = vector.shape_cast %139 : vector<16xf32> to vector<16x1xf32>
    %cst_52 = arith.constant dense<0.000000e+00> : vector<1xf32>
    %141 = vector.multi_reduction <add>, %140, %cst_52 [0] : vector<16x1xf32> to vector<1xf32>
    %142 = vector.shape_cast %141 : vector<1xf32> to vector<1x1xf32>
    %cst_53 = arith.constant 4.096000e+03 : f32
    %143 = vector.broadcast %cst_53 : f32 to vector<1x1xf32>
    %144 = arith.divf %142, %143 : vector<1x1xf32>
    %145 = vector.broadcast %144 : vector<1x1xf32> to vector<16x256xf32>
    %146 = arith.subf %138, %145 : vector<16x256xf32>
    %147 = arith.mulf %146, %146 : vector<16x256xf32>
    %cst_54 = arith.constant dense<0.000000e+00> : vector<16xf32>
    %148 = vector.multi_reduction <add>, %147, %cst_54 [1] : vector<16x256xf32> to vector<16xf32>
    %149 = vector.shape_cast %148 : vector<16xf32> to vector<16x1xf32>
    %cst_55 = arith.constant dense<0.000000e+00> : vector<1xf32>
    %150 = vector.multi_reduction <add>, %149, %cst_55 [0] : vector<16x1xf32> to vector<1xf32>
    %151 = vector.shape_cast %150 : vector<1xf32> to vector<1x1xf32>
    %cst_56 = arith.constant 4.096000e+03 : f32
    %152 = vector.broadcast %cst_56 : f32 to vector<1x1xf32>
    %153 = arith.divf %151, %152 : vector<1x1xf32>
    %cst_57 = arith.constant 9.99999974E-6 : f32
    %154 = vector.broadcast %cst_57 : f32 to vector<1x1xf32>
    %155 = arith.addf %153, %154 : vector<1x1xf32>
    %156 = math.rsqrt %155 : vector<1x1xf32>
    %157 = vector.broadcast %156 : vector<1x1xf32> to vector<16x256xf32>
    %158 = arith.mulf %146, %157 : vector<16x256xf32>
    %159 = arith.addf %134, %158 : vector<16x256xf32>
    %cst_58 = arith.constant 0.000000e+00 : f32
    %160 = vector.broadcast %cst_58 : f32 to vector<16x256xf32>
    %161 = arith.maximumf %159, %160 : vector<16x256xf32>
    %c0_59 = arith.constant 0 : index
    %c0_60 = arith.constant 0 : index
    %c0_61 = arith.constant 0 : index
    %162 = vector.load %arg7[%c0_59, %c0_60, %c0_61] : memref<1x16x256xf32, #tpu.memory_space<vmem>>, vector<1x16x256xf32>
    %163 = vector.shape_cast %162 : vector<1x16x256xf32> to vector<16x256xf32>
    %164 = vector.shape_cast %161 : vector<16x256xf32> to vector<1x16x256xf32>
    tpu.vector_store %arg7[%c0_59, %c0_60, %c0_61], %164 {strides = array<i32>} : memref<1x16x256xf32, #tpu.memory_space<vmem>>, vector<1x16x256xf32>,
    return
  }
  func.func @transform_0(%arg0: i32, %arg1: i32) -> (i32, i32, i32) {
    %c0_i32 = arith.constant 0 : i32
    %c0_i32_0 = arith.constant 0 : i32
    return %arg1, %arg0, %c0_i32 : i32, i32, i32
  }
  func.func @transform_1(%arg0: i32, %arg1: i32) -> (i32, i32, i32) {
    %c0_i32 = arith.constant 0 : i32
    %c0_i32_0 = arith.constant 0 : i32
    %c0_i32_1 = arith.constant 0 : i32
    return %arg0, %c0_i32, %c0_i32_0 : i32, i32, i32
  }
  func.func @transform_2(%arg0: i32, %arg1: i32) -> (i32, i32, i32) {
    %c0_i32 = arith.constant 0 : i32
    %c0_i32_0 = arith.constant 0 : i32
    %c0_i32_1 = arith.constant 0 : i32
    return %arg0, %c0_i32, %c0_i32_0 : i32, i32, i32
  }
  func.func @transform_3(%arg0: i32, %arg1: i32) -> (i32, i32, i32) {
    %c0_i32 = arith.constant 0 : i32
    %c0_i32_0 = arith.constant 0 : i32
    %c0_i32_1 = arith.constant 0 : i32
    return %arg0, %c0_i32, %c0_i32_0 : i32, i32, i32
  }
  func.func @transform_4(%arg0: i32, %arg1: i32) -> (i32, i32, i32) {
    %c0_i32 = arith.constant 0 : i32
    %c0_i32_0 = arith.constant 0 : i32
    %c0_i32_1 = arith.constant 0 : i32
    return %arg0, %c0_i32, %c0_i32_0 : i32, i32, i32
  }
  func.func @transform_5(%arg0: i32, %arg1: i32) -> (i32, i32, i32) {
    %c0_i32 = arith.constant 0 : i32
    %c0_i32_0 = arith.constant 0 : i32
    return %arg1, %arg0, %c0_i32 : i32, i32, i32
  }
}

</mosaic_0001>

<llo_original>
// kernel: bottleneck_forward.1
$region0: #{bottleneck_forward.1}
  #allocation0 [shape = 'u32[]', space=smem, size = 0x4, offset = 0x4, fixed_abs, tag = 'smem constant byte address 0x4 - core index']
  #allocation1 [shape = 'u32[144,128]{1,0:T(1,128)}', space=vmem, size = 0x12000, scoped, tag = 'internal scratch']
  %s0 = inlined_call_operand.vmem [shape: f32[2,4,256], index: 0, kind: input, shape index: {}]
  %s1 = inlined_call_operand.vmem [shape: bf16[1,4,4], index: 1, kind: input, shape index: {}]
  %s2 = inlined_call_operand.vmem [shape: bf16[1,4,36], index: 2, kind: input, shape index: {}]
  %s3 = inlined_call_operand.vmem [shape: bf16[1,16,4], index: 3, kind: input, shape index: {}]
  %s4 = inlined_call_operand.vmem [shape: bf16[1,16,4], index: 4, kind: input, shape index: {}]
  %s5 = inlined_call_operand.vmem [shape: f32[2,16,256], index: 5, kind: output, shape index: {}]
  %s6 = sld [smem:[#allocation0]]
  $region53: #{bottleneck_forward.1} parent=0
    _
  %s8 = ssub.s32 1, %s6
  %s9 = scalar_select 0, %s8, %s6
  loop: start=0, step=1, limit=4
  $region2: #{bottleneck_forward.1} parent=0 // loop_pre_header
    _
  $region3: #{bottleneck_forward.1} parent=0 // loop_header
    %s11 = sphi 0, %s15
    %p12 = scmp.ge.s32.totalorder %s11, 4
    %s18 = sphi 0, %s30
    %s19 = sphi 0, %s26
    %s20 = sphi 0, %s18
    %s21 = sphi 0, %s19
    %s22 = sphi 0, %s20
    %s23 = sphi 0, %s21
    %s35 = sphi 0, %s37
    %s38 = sphi 0, %s35
    %s39 = sphi 0, %s38
    %s55 = sphi 0, %s39
    %s61 = sphi 0, %s63
    %s64 = sphi 0, %s61
    %s65 = sphi 0, %s64
    %s81 = sphi 0, %s65
    %s87 = sphi 0, %s89
    %s90 = sphi 0, %s87
    %s91 = sphi 0, %s90
    %s107 = sphi 0, %s91
    %s113 = sphi 0, %s115
    %s116 = sphi 0, %s113
    %s117 = sphi 0, %s116
    %s133 = sphi 0, %s117
    %s139 = sphi 0, %s141
    %s142 = sphi 0, %s139
    %s143 = sphi 0, %s142
    %s159 = sphi 0, %s143
    %s167 = sphi 0, %s169
    %s170 = sphi 0, %s167
    %s171 = sphi 0, %s170
    %s187 = sphi 0, %s171
  $region4: #{bottleneck_forward.1} parent=0 // loop_header_branch
    %14 = sbr.rel (%p12) target = $region8
  $region5: #{bottleneck_forward.1} parent=0 // loop_body
    %s16 = ssub.s32 %s11, 1
    %s17 = ssub.s32 %s11, 2
    %s24 = sadd.s32 1, %s19
    %p25 = scmp.ge.s32.totalorder %s24, 2
    %s26 = scalar_select %p25, 0, %s24
    %s27 = sadd.s32 1, %s18
    %s28 = scalar_select %p25, %s27, %s18
    %p29 = scmp.ge.s32.totalorder %s28, 1
    %s30 = scalar_select %p29, 0, %s28
    %s31 = ssub.s32 %s19, %s26
    %s32 = ssub.s32 %s18, %s30
    %s33 = sor.u32 %s31, %s32
    %p34 = scmp.eq.s32.totalorder %s33, 0
    %s36 = sadd.s32 %s35, 1
    %s37 = scalar_select %p34, %s35, %s36
    %p40 = pneg %p34
    %p41 = scmp.eq.s32.totalorder %s11, 1
    %p42 = por %p40, %p41
    %p43 = scmp.ne.s32.totalorder %s35, %s38
    %p44 = scmp.eq.s32.totalorder %s11, 0
    %p45 = por %p43, %p44
    %p46 = scmp.ne.s32.totalorder %s35, %s38
    %p47 = scmp.eq.s32.totalorder %s16, 1
    %p48 = por %p46, %p47
    %p49 = scmp.ne.s32.totalorder %s38, %s39
    %p50 = scmp.eq.s32.totalorder %s16, 0
    %p51 = por %p49, %p50
    %p52 = scmp.ne.s32.totalorder %s38, %s39
    %p53 = scmp.eq.s32.totalorder %s17, 1
    %p54 = por %p52, %p53
    %p56 = scmp.ne.s32.totalorder %s39, %s55
    %p57 = scmp.eq.s32.totalorder %s17, 0
    %p58 = por %p56, %p57
    %s59 = ssub.s32 %s18, %s30
    %p60 = scmp.eq.s32.totalorder %s59, 0
    %s62 = sadd.s32 %s61, 1
    %s63 = scalar_select %p60, %s61, %s62
    %p66 = pneg %p60
    %p67 = scmp.eq.s32.totalorder %s11, 1
    %p68 = por %p66, %p67
    %p69 = scmp.ne.s32.totalorder %s61, %s64
    %p70 = scmp.eq.s32.totalorder %s11, 0
    %p71 = por %p69, %p70
    %p72 = scmp.ne.s32.totalorder %s61, %s64
    %p73 = scmp.eq.s32.totalorder %s16, 1
    %p74 = por %p72, %p73
    %p75 = scmp.ne.s32.totalorder %s64, %s65
    %p76 = scmp.eq.s32.totalorder %s16, 0
    %p77 = por %p75, %p76
    %p78 = scmp.ne.s32.totalorder %s64, %s65
    %p79 = scmp.eq.s32.totalorder %s17, 1
    %p80 = por %p78, %p79
    %p82 = scmp.ne.s32.totalorder %s65, %s81
    %p83 = scmp.eq.s32.totalorder %s17, 0
    %p84 = por %p82, %p83
    %s85 = ssub.s32 %s18, %s30
    %p86 = scmp.eq.s32.totalorder %s85, 0
    %s88 = sadd.s32 %s87, 1
    %s89 = scalar_select %p86, %s87, %s88
    %p92 = pneg %p86
    %p93 = scmp.eq.s32.totalorder %s11, 1
    %p94 = por %p92, %p93
    %p95 = scmp.ne.s32.totalorder %s87, %s90
    %p96 = scmp.eq.s32.totalorder %s11, 0
    %p97 = por %p95, %p96
    %p98 = scmp.ne.s32.totalorder %s87, %s90
    %p99 = scmp.eq.s32.totalorder %s16, 1
    %p100 = por %p98, %p99
    %p101 = scmp.ne.s32.totalorder %s90, %s91
    %p102 = scmp.eq.s32.totalorder %s16, 0
    %p103 = por %p101, %p102
    %p104 = scmp.ne.s32.totalorder %s90, %s91
    %p105 = scmp.eq.s32.totalorder %s17, 1
    %p106 = por %p104, %p105
    %p108 = scmp.ne.s32.totalorder %s91, %s107
    %p109 = scmp.eq.s32.totalorder %s17, 0
    %p110 = por %p108, %p109
    %s111 = ssub.s32 %s18, %s30
    %p112 = scmp.eq.s32.totalorder %s111, 0
    %s114 = sadd.s32 %s113, 1
    %s115 = scalar_select %p112, %s113, %s114
    %p118 = pneg %p112
    %p119 = scmp.eq.s32.totalorder %s11, 1
    %p120 = por %p118, %p119
    %p121 = scmp.ne.s32.totalorder %s113, %s116
    %p122 = scmp.eq.s32.totalorder %s11, 0
    %p123 = por %p121, %p122
    %p124 = scmp.ne.s32.totalorder %s113, %s116
    %p125 = scmp.eq.s32.totalorder %s16, 1
    %p126 = por %p124, %p125
    %p127 = scmp.ne.s32.totalorder %s116, %s117
    %p128 = scmp.eq.s32.totalorder %s16, 0
    %p129 = por %p127, %p128
    %p130 = scmp.ne.s32.totalorder %s116, %s117
    %p131 = scmp.eq.s32.totalorder %s17, 1
    %p132 = por %p130, %p131
    %p134 = scmp.ne.s32.totalorder %s117, %s133
    %p135 = scmp.eq.s32.totalorder %s17, 0
    %p136 = por %p134, %p135
    %s137 = ssub.s32 %s18, %s30
    %p138 = scmp.eq.s32.totalorder %s137, 0
    %s140 = sadd.s32 %s139, 1
    %s141 = scalar_select %p138, %s139, %s140
    %p144 = pneg %p138
    %p145 = scmp.eq.s32.totalorder %s11, 1
    %p146 = por %p144, %p145
    %p147 = scmp.ne.s32.totalorder %s139, %s142
    %p148 = scmp.eq.s32.totalorder %s11, 0
    %p149 = por %p147, %p148
    %p150 = scmp.ne.s32.totalorder %s139, %s142
    %p151 = scmp.eq.s32.totalorder %s16, 1
    %p152 = por %p150, %p151
    %p153 = scmp.ne.s32.totalorder %s142, %s143
    %p154 = scmp.eq.s32.totalorder %s16, 0
    %p155 = por %p153, %p154
    %p156 = scmp.ne.s32.totalorder %s142, %s143
    %p157 = scmp.eq.s32.totalorder %s17, 1
    %p158 = por %p156, %p157
    %p160 = scmp.ne.s32.totalorder %s143, %s159
    %p161 = scmp.eq.s32.totalorder %s17, 0
    %p162 = por %p160, %p161
    %s163 = ssub.s32 %s19, %s26
    %s164 = ssub.s32 %s18, %s30
    %s165 = sor.u32 %s163, %s164
    %p166 = scmp.eq.s32.totalorder %s165, 0
    %s168 = sadd.s32 %s167, 1
    %s169 = scalar_select %p166, %s167, %s168
    %p172 = pneg %p166
    %p173 = scmp.eq.s32.totalorder %s11, 1
    %p174 = por %p172, %p173
    %p175 = scmp.ne.s32.totalorder %s167, %s170
    %p176 = scmp.eq.s32.totalorder %s11, 0
    %p177 = por %p175, %p176
    %p178 = scmp.ne.s32.totalorder %s167, %s170
    %p179 = scmp.eq.s32.totalorder %s16, 1
    %p180 = por %p178, %p179
    %p181 = scmp.ne.s32.totalorder %s170, %s171
    %p182 = scmp.eq.s32.totalorder %s16, 0
    %p183 = por %p181, %p182
    %p184 = scmp.ne.s32.totalorder %s170, %s171
    %p185 = scmp.eq.s32.totalorder %s17, 1
    %p186 = por %p184, %p185
    %p188 = scmp.ne.s32.totalorder %s171, %s187
    %p189 = scmp.eq.s32.totalorder %s17, 0
    %p190 = por %p188, %p189
    %p191 = scmp.le.s32.totalorder 1, %s11
    %p192 = scmp.lt.s32.totalorder %s11, 3
    %p193 = pnand %p191, %p192
    %p194 = pneg %p193
    // Predicated region
    $region9: #{bottleneck_forward.1} parent=5 // pred_check
      _
    $region10: #{bottleneck_forward.1} parent=5 // pred_check_branch
      %196 = sbr.rel (%p193) target = $region12
    $region11: #{bottleneck_forward.1} parent=5 // pred_region
      %s197 = ssub.s32 %s11, 1
      // Predicated region
      $region13: #{bottleneck_forward.1} parent=11 // pred_check
        %p198 = pneg %p77
      $region14: #{bottleneck_forward.1} parent=11 // pred_check_branch
        %200 = sbr.rel (%p198) target = $region16
      $region15: #{bottleneck_forward.1} parent=11 // pred_region
        %p201 = scmp.lt.s32.totalorder %s20, 0
        %s202 = scalar_select %p201, %s20, 0
        %s203 = smul.addr %s202, 2
        %s204 = scalar_lea.vmem %s1, %s203
      $region16: #{bottleneck_forward.1} parent=11 // pred_fallthru
        _
      // Predicated region
      $region17: #{bottleneck_forward.1} parent=11 // pred_check
        %p205 = pneg %p103
      $region18: #{bottleneck_forward.1} parent=11 // pred_check_branch
        %207 = sbr.rel (%p205) target = $region20
      $region19: #{bottleneck_forward.1} parent=11 // pred_region
        %p208 = scmp.lt.s32.totalorder %s20, 0
        %s209 = scalar_select %p208, %s20, 0
        %s210 = smul.addr %s209, 2
        %s211 = scalar_lea.vmem %s2, %s210
      $region20: #{bottleneck_forward.1} parent=11 // pred_fallthru
        _
      // Predicated region
      $region21: #{bottleneck_forward.1} parent=11 // pred_check
        %p212 = pneg %p129
      $region22: #{bottleneck_forward.1} parent=11 // pred_check_branch
        %214 = sbr.rel (%p212) target = $region24
      $region23: #{bottleneck_forward.1} parent=11 // pred_region
        %p215 = scmp.lt.s32.totalorder %s20, 0
        %s216 = scalar_select %p215, %s20, 0
        %s217 = smul.addr %s216, 2
        %s218 = smul.addr %s217, 4
        %s219 = scalar_lea.vmem %s3, %s218
      $region24: #{bottleneck_forward.1} parent=11 // pred_fallthru
        _
      // Predicated region
      $region25: #{bottleneck_forward.1} parent=11 // pred_check
        %p220 = pneg %p155
      $region26: #{bottleneck_forward.1} parent=11 // pred_check_branch
        %222 = sbr.rel (%p220) target = $region28
      $region27: #{bottleneck_forward.1} parent=11 // pred_region
        %p223 = scmp.lt.s32.totalorder %s20, 0
        %s224 = scalar_select %p223, %s20, 0
        %s225 = smul.addr %s224, 2
        %s226 = smul.addr %s225, 4
        %s227 = scalar_lea.vmem %s4, %s226
      $region28: #{bottleneck_forward.1} parent=11 // pred_fallthru
        _
    $region12: #{bottleneck_forward.1} parent=5 // pred_fallthru
      _
    %p228 = scmp.lt.s32.totalorder %s11, 2
    // Predicated region
    $region29: #{bottleneck_forward.1} parent=5 // pred_check
      %p229 = pneg %p228
    $region30: #{bottleneck_forward.1} parent=5 // pred_check_branch
      %231 = sbr.rel (%p229) target = $region32
    $region31: #{bottleneck_forward.1} parent=5 // pred_region
      // Predicated region
      $region33: #{bottleneck_forward.1} parent=31 // pred_check
        %p232 = pneg %p45
      $region34: #{bottleneck_forward.1} parent=31 // pred_check_branch
        %234 = sbr.rel (%p232) target = $region36
      $region35: #{bottleneck_forward.1} parent=31 // pred_region
        %p235 = scmp.lt.s32.totalorder %s19, 1
        %s236 = scalar_select %p235, %s19, 1
        %p237 = scmp.lt.s32.totalorder %s18, 0
        %s238 = scalar_select %p237, %s18, 0
        %s239 = smul.addr %s238, 2
        %s240 = smul.addr %s236, 2
        %s241 = sadd.s32 %s239, %s240
        %s242 = smul.addr %s241, 4
        %s243 = scalar_lea.vmem %s0, %s242
      $region36: #{bottleneck_forward.1} parent=31 // pred_fallthru
        _
    $region32: #{bottleneck_forward.1} parent=5 // pred_fallthru
      _
    %p244 = scmp.le.s32.totalorder 1, %s11
    %p245 = scmp.lt.s32.totalorder %s11, 3
    %p246 = pnand %p244, %p245
    %p247 = pneg %p246
    // Predicated region
    $region37: #{bottleneck_forward.1} parent=5 // pred_check
      _
    $region38: #{bottleneck_forward.1} parent=5 // pred_check_branch
      %249 = sbr.rel (%p246) target = $region40
    $region39: #{bottleneck_forward.1} parent=5 // pred_region
      %s250 = ssub.s32 %s11, 1
      %p251 = scmp.lt.s32.totalorder %s21, 1
      %s252 = scalar_select %p251, %s21, 1
      %p253 = scmp.lt.s32.totalorder %s20, 0
      %s254 = scalar_select %p253, %s20, 0
      %s255 = smul.addr %s254, 2
      %s256 = smul.addr %s252, 2
      %s257 = sadd.s32 %s255, %s256
      %s258 = smul.addr %s257, 4
      %s259 = scalar_lea.vmem %s0, %s258
      %p260 = pneg %p51
      %p261 = pneg %p48
      %p262 = scmp.lt.s32.totalorder %s20, 0
      %s263 = scalar_select %p262, %s20, 0
      %s264 = smul.addr %s263, 2
      %s265 = scalar_lea.vmem %s1, %s264
      %p266 = pneg %p77
      %p267 = pneg %p74
      %p268 = scmp.lt.s32.totalorder %s20, 0
      %s269 = scalar_select %p268, %s20, 0
      %s270 = smul.addr %s269, 2
      %s271 = scalar_lea.vmem %s2, %s270
      %p272 = pneg %p103
      %p273 = pneg %p100
      %p274 = scmp.lt.s32.totalorder %s20, 0
      %s275 = scalar_select %p274, %s20, 0
      %s276 = smul.addr %s275, 2
      %s277 = smul.addr %s276, 4
      %s278 = scalar_lea.vmem %s3, %s277
      %p279 = pneg %p129
      %p280 = pneg %p126
      %p281 = scmp.lt.s32.totalorder %s20, 0
      %s282 = scalar_select %p281, %s20, 0
      %s283 = smul.addr %s282, 2
      %s284 = smul.addr %s283, 4
      %s285 = scalar_lea.vmem %s4, %s284
      %p286 = pneg %p155
      %p287 = pneg %p152
      %p288 = pneg %p183
      %p289 = pneg %p180
      %s290 = smul.u32 2, %s20
      %p291 = scmp.lt.s32.totalorder %s21, 1
      %s292 = scalar_select %p291, %s21, 1
      %p293 = scmp.lt.s32.totalorder %s290, 1
      %s294 = scalar_select %p293, %s290, 1
      %s295 = smul.addr %s294, 2
      %s296 = smul.addr %s292, 4
      %s297 = sadd.s32 %s295, %s296
      %s298 = smul.addr %s297, 8
      %s299 = scalar_lea.vmem %s5, %s298
      %p300 = scmp.lt.s32.totalorder %s21, 1
      %s301 = scalar_select %p300, %s21, 1
      %p302 = scmp.lt.s32.totalorder %s20, 0
      %s303 = scalar_select %p302, %s20, 0
      %s304 = smul.addr %s303, 2
      %s305 = smul.addr %s301, 2
      %s306 = sadd.s32 %s304, %s305
      %s307 = smul.addr %s306, 4
      %s308 = scalar_lea.vmem %s0, %s307
      %p309 = scmp.lt.s32.totalorder %s20, 0
      %s310 = scalar_select %p309, %s20, 0
      %s311 = smul.addr %s310, 2
      %s312 = scalar_lea.vmem %s1, %s311
      %p313 = scmp.lt.s32.totalorder %s20, 0
      %s314 = scalar_select %p313, %s20, 0
      %s315 = smul.addr %s314, 2
      %s316 = scalar_lea.vmem %s2, %s315
      %p317 = scmp.lt.s32.totalorder %s20, 0
      %s318 = scalar_select %p317, %s20, 0
      %s319 = smul.addr %s318, 2
      %s320 = smul.addr %s319, 4
      %s321 = scalar_lea.vmem %s3, %s320
      %p322 = scmp.lt.s32.totalorder %s20, 0
      %s323 = scalar_select %p322, %s20, 0
      %s324 = smul.addr %s323, 2
      %s325 = smul.addr %s324, 4
      %s326 = scalar_lea.vmem %s4, %s325
      %s327 = smul.u32 2, %s20
      %p328 = scmp.lt.s32.totalorder %s21, 1
      %s329 = scalar_select %p328, %s21, 1
      %p330 = scmp.lt.s32.totalorder %s327, 1
      %s331 = scalar_select %p330, %s327, 1
      %s332 = smul.addr %s331, 2
      %s333 = smul.addr %s329, 4
      %s334 = sadd.s32 %s332, %s333
      %s335 = smul.addr %s334, 8
      %s336 = scalar_lea.vmem %s5, %s335
      %s337 = smul.u32 2, %s20
      %v339 = vld [vmem:[%s308] sm:$0xff]
      %v340 = vld [vmem:[%s312] sm:$0x3]
      %v342 = vcombine.high %v339, %v339
      %v344 = vpack.c.bf16 %v339, %v339
      %v345 = vpack.c.bf16 %v342, %v342
      %vm346 = vcmask 31744
      %v348 = vsel %vm346, %v340, 0
      %vm350 = vcmask 1041408
      %v352 = vsel %vm350, %v344, 0
      %v355 = vsel %vm350, %v345, 0
      %357 = vmatprep.subr.bf16.mxu0 %v355
      %358 = vmatpush1.bf16.msra.mxu0 %v352
      %359 = vmatprep.subr.bf16.mxu0 0
      %360 = vmatpush1.bf16.msra.mxu0 0
      %361 = vmatprep.subr.bf16.mxu0 0
      %362 = vmatpush1.bf16.msra.mxu0 0
      %363 = vmatprep.subr.bf16.mxu0 0
      %364 = vmatpush1.bf16.msra.mxu0 0
      %365 = vmatprep.subr.bf16.mxu0 0
      %366 = vmatpush1.bf16.msra.mxu0 0
      %367 = vmatprep.subr.bf16.mxu0 0
      %368 = vmatpush1.bf16.msra.mxu0 0
      %369 = vmatprep.subr.bf16.mxu0 0
      %370 = vmatpush1.bf16.msra.mxu0 0
      %371 = vmatprep.subr.bf16.mxu0 0
      %372 = vmatpush1.bf16.msra.mxu0 0
      %373 = vmatprep.subr.bf16.mxu0 0
      %374 = vmatpush1.bf16.msra.mxu0 0
      %375 = vmatprep.subr.bf16.mxu0 0
      %376 = vmatpush1.bf16.msra.mxu0 0
      %377 = vmatprep.subr.bf16.mxu0 0
      %378 = vmatpush1.bf16.msra.mxu0 0
      %379 = vmatprep.subr.bf16.mxu0 0
      %380 = vmatpush1.bf16.msra.mxu0 0
      %381 = vmatprep.subr.bf16.mxu0 0
      %382 = vmatpush1.bf16.msra.mxu0 0
      %383 = vmatprep.subr.bf16.mxu0 0
      %384 = vmatpush1.bf16.msra.mxu0 0
      %385 = vmatprep.subr.bf16.mxu0 0
      %386 = vmatpush1.bf16.msra.mxu0 0
      %387 = vmatprep.subr.bf16.mxu0 0
      %388 = vmatpush1.bf16.msra.mxu0 0
      %389 = vmatprep.mubr.bf16.mxu0 0
      %390 = vmatmul.mubr.bf16.gmra.mrb[0].mxu0 %v348
      %v391 = vpop.f32.mrb[0].mxu0
      %v392 = vadd.f32 0.0, %v391
      %v393 = vpop.f32.mrb[0].mxu0
      %v394 = vadd.f32 0.0, %v393
      %v395 = vpop.f32.mrb[0].mxu0
      %v396 = vpop.f32.mrb[0].mxu0
      %397 = vdwg.mxu0
      %vm398 = vcmask 1043456
      %v399 = vsel %vm398, %v392, 0.0
      %v400 = vsel %vm398, %v394, 0.0
      %v401 = vadd.f32 %v399, %v400
      %402 = vadd.xlane.f32.xlu0 %v401
      %v403 = vpop.xlane.xlu0 %402
      %v404 = vsel %vm398, %v403, 0.0
      %v405 = vrot.slane %v404, 4
      %v406 = vadd.f32 %v404, %v405
      %v407 = vrot.slane %v406, 2
      %v408 = vadd.f32 %v406, %v407
      %v409 = vrot.slane %v408, 1
      %v410 = vadd.f32 %v408, %v409
      %v411 = vrcp.pop 1024.0
      %v412 = vmul.f32 %v410, %v411
      %v413 = vsub.f32 %v392, %v412
      %v414 = vsub.f32 %v394, %v412
      %v415 = vmul.f32 %v413, %v413
      %v416 = vmul.f32 %v414, %v414
      %v417 = vsel %vm398, %v415, 0.0
      %v418 = vsel %vm398, %v416, 0.0
      %v419 = vadd.f32 %v417, %v418
      %420 = vadd.xlane.f32.xlu0 %v419
      %v421 = vpop.xlane.xlu0 %420
      %v422 = vsel %vm398, %v421, 0.0
      %v423 = vrot.slane %v422, 4
      %v424 = vadd.f32 %v422, %v423
      %v425 = vrot.slane %v424, 2
      %v426 = vadd.f32 %v424, %v425
      %v427 = vrot.slane %v426, 1
      %v428 = vadd.f32 %v426, %v427
      %v429 = vmul.f32 %v428, %v411
      %v430 = vadd.f32 %v429, 1e-05
      %v431 = vrsqrt.pop %v430
      %v432 = vmul.f32 %v413, %v431
      %v433 = vmul.f32 %v414, %v431
      %v434 = vmax.f32 %v432, 0.0
      %v435 = vmax.f32 %v433, 0.0
      %438 = vrot.lane.b32.xlu0 %v434, 17
      %v439 = vpop.permute.xlu0 %438
      %440 = vrot.lane.b32.xlu0 %v435, 17
      %v441 = vpop.permute.xlu0 %440
      %vm442 = vcmask 138240
      %v443 = vsel %vm442, %v439, %v441
      %v447 = vsel %vm442, 0.0, %v439
      %v448 = vsel %vm442, %v441, 0.0
      %v449 = vlaneseq
      %v450 = vand.u32 %v449, 127
      %v451 = vadd.s32 %v450, 128
      %vm452 = vcmp.lt.s32.totalorder %v450, 0
      %v453 = vsub.s32 0, %v450
      %v454 = vsel %vm452, %v453, %v450
      %v455 = vshrl.u32 %v454, 4
      %v456 = vand.u32 %v454, 15
      %v457 = vsub.s32 0, %v456
      %v458 = vsel %vm452, %v457, %v456
      %vm459 = vcmp.lt.s32.totalorder %v451, 0
      %v460 = vsub.s32 0, %v451
      %v461 = vsel %vm459, %v460, %v451
      %v462 = vshrl.u32 %v461, 4
      %v463 = vand.u32 %v461, 15
      %v464 = vsub.s32 0, %v463
      %v465 = vsel %vm459, %v464, %v463
      %vm466 = vcmp.ne.s32.totalorder %v458, 0
      %vm467 = vcmp.ne.s32.totalorder %v465, 0
      %vm468 = vcmp.lt.s32.totalorder %v458, 0
      %vm469 = vcmp.lt.s32.totalorder %v465, 0
      %vm470 = vmand %vm468, %vm466
      %vm471 = vmand %vm469, %vm467
      %v472 = vadd.s32 %v458, 16
      %v473 = vadd.s32 %v465, 16
      %v474 = vsel %vm470, %v472, %v458
      %v475 = vsel %vm471, %v473, %v465
      %vm476 = vcmp.ge.s32.totalorder %v474, 1
      %vm477 = vcmp.ge.s32.totalorder %v475, 1
      %vm478 = vcmp.le.s32.totalorder %v474, 14
      %vm479 = vcmp.le.s32.totalorder %v475, 14
      %v480 = vsel %vm476, 1, 0
      %v481 = vsel %vm477, 1, 0
      %vm482 = vcmp.eq.s32.totalorder %v480, 1
      %vm483 = vcmp.eq.s32.totalorder %v481, 1
      %v484 = vsel %vm482, %v447, 0.0
      %v485 = vsel %vm483, %v443, 0.0
      %v486 = vsel %vm478, 1, 0
      %v487 = vsel %vm479, 1, 0
      %vm488 = vcmp.eq.s32.totalorder %v486, 1
      %vm489 = vcmp.eq.s32.totalorder %v487, 1
      %492 = vrot.lane.b32.xlu0 %v447, 126
      %v493 = vpop.permute.xlu0 %492
      %494 = vrot.lane.b32.xlu0 %v443, 126
      %v495 = vpop.permute.xlu0 %494
      %496 = vrot.lane.b32.xlu0 %v448, 126
      %v497 = vpop.permute.xlu0 %496
      %vm498 = vcmask 1031168
      %v499 = vsel %vm498, %v493, %v495
      %v500 = vsel %vm498, %v495, %v497
      %v503 = vsel %vm488, %v499, 0.0
      %v504 = vsel %vm489, %v500, 0.0
      %505 = vrot.lane.b32.xlu0 %v447, 112
      %v506 = vpop.permute.xlu0 %505
      %507 = vrot.lane.b32.xlu0 %v443, 112
      %v508 = vpop.permute.xlu0 %507
      %509 = vrot.lane.b32.xlu0 %v448, 112
      %v510 = vpop.permute.xlu0 %509
      %vm511 = vcmask 916480
      %v512 = vsel %vm511, %v506, %v508
      %v513 = vsel %vm511, %v508, %v510
      %v516 = vsel %vm482, %v512, 0.0
      %v517 = vsel %vm483, %v513, 0.0
      %518 = vrot.lane.b32.xlu0 %v447, 110
      %v519 = vpop.permute.xlu0 %518
      %520 = vrot.lane.b32.xlu0 %v443, 110
      %v521 = vpop.permute.xlu0 %520
      %522 = vrot.lane.b32.xlu0 %v448, 110
      %v523 = vpop.permute.xlu0 %522
      %vm524 = vcmask 900096
      %v525 = vsel %vm524, %v519, %v521
      %v526 = vsel %vm524, %v521, %v523
      %v529 = vsel %vm488, %v525, 0.0
      %v530 = vsel %vm489, %v526, 0.0
      %531 = vrot.lane.b32.xlu0 %v447, 96
      %v532 = vpop.permute.xlu0 %531
      %533 = vrot.lane.b32.xlu0 %v443, 96
      %v534 = vpop.permute.xlu0 %533
      %535 = vrot.lane.b32.xlu0 %v448, 96
      %v536 = vpop.permute.xlu0 %535
      %vm537 = vcmask 785408
      %v538 = vsel %vm537, %v532, %v534
      %v539 = vsel %vm537, %v534, %v536
      %v542 = vsel %vm482, %v538, 0.0
      %v543 = vsel %vm483, %v539, 0.0
      %544 = vrot.lane.b32.xlu0 %v447, 94
      %v545 = vpop.permute.xlu0 %544
      %546 = vrot.lane.b32.xlu0 %v443, 94
      %v547 = vpop.permute.xlu0 %546
      %548 = vrot.lane.b32.xlu0 %v448, 94
      %v549 = vpop.permute.xlu0 %548
      %vm550 = vcmask 769024
      %v551 = vsel %vm550, %v545, %v547
      %v552 = vsel %vm550, %v547, %v549
      %v555 = vsel %vm488, %v551, 0.0
      %v556 = vsel %vm489, %v552, 0.0
      %v557 = vrot.slane %v447, 4
      %v558 = vrot.slane %v443, 4
      %v559 = vrot.slane %v448, 4
      %560 = vrot.lane.b32.xlu0 %v557, 127
      %v561 = vpop.permute.xlu0 %560
      %562 = vrot.lane.b32.xlu0 %v558, 127
      %v563 = vpop.permute.xlu0 %562
      %564 = vrot.lane.b32.xlu0 %v559, 127
      %v565 = vpop.permute.xlu0 %564
      %vm566 = vcmask 1039360
      %v567 = vsel %vm566, %v561, %v563
      %v568 = vsel %vm566, %v563, %v565
      %v573 = vrot.slane %v516, 4
      %v574 = vrot.slane %v517, 4
      %577 = vrot.lane.b32.xlu0 %v447, 111
      %v578 = vpop.permute.xlu0 %577
      %579 = vrot.lane.b32.xlu0 %v443, 111
      %v580 = vpop.permute.xlu0 %579
      %581 = vrot.lane.b32.xlu0 %v448, 111
      %v582 = vpop.permute.xlu0 %581
      %vm583 = vcmask 908288
      %v584 = vsel %vm583, %v578, %v580
      %v585 = vsel %vm583, %v580, %v582
      %v590 = vrot.slane %v529, 4
      %v591 = vrot.slane %v530, 4
      %594 = vrot.lane.b32.xlu0 %v557, 95
      %v595 = vpop.permute.xlu0 %594
      %596 = vrot.lane.b32.xlu0 %v558, 95
      %v597 = vpop.permute.xlu0 %596
      %598 = vrot.lane.b32.xlu0 %v559, 95
      %v599 = vpop.permute.xlu0 %598
      %vm600 = vcmask 777216
      %v601 = vsel %vm600, %v595, %v597
      %v602 = vsel %vm600, %v597, %v599
      %v605 = vsel %vm398, %v484, %v567
      %v606 = vsel %vm398, %v485, %v568
      %v607 = vsel %vm398, %v503, %v573
      %v608 = vsel %vm398, %v504, %v574
      %v609 = vsel %vm398, %v584, %v590
      %v610 = vsel %vm398, %v585, %v591
      %v611 = vsel %vm398, %v542, %v601
      %v612 = vsel %vm398, %v543, %v602
      %v613 = vpack.c.bf16 %v607, %v605
      %v614 = vpack.c.bf16 %v608, %v606
      %v615 = vpack.c.bf16 %v611, %v609
      %v616 = vpack.c.bf16 %v612, %v610
      %v617 = vpack.c.bf16 %v555, %v555
      %v618 = vpack.c.bf16 %v556, %v556
      %v619 = vld [vmem:[%s316] sm:$0x3]
      %vm620 = vcmask 293888
      %v622 = vsel %vm620, %v619, 0
      %v625 = vsel %vm350, %v617, 0
      %v628 = vsel %vm350, %v618, 0
      %630 = vmatprep.subr.bf16.mxu0 %v614
      %631 = vmatpush1.bf16.msra.mxu0 %v613
      %632 = vmatprep.subr.bf16.mxu0 %v616
      %633 = vmatpush1.bf16.msra.mxu0 %v615
      %634 = vmatprep.subr.bf16.mxu0 %v628
      %635 = vmatpush1.bf16.msra.mxu0 %v625
      %636 = vmatprep.subr.bf16.mxu0 0
      %637 = vmatpush1.bf16.msra.mxu0 0
      %638 = vmatprep.subr.bf16.mxu0 0
      %639 = vmatpush1.bf16.msra.mxu0 0
      %640 = vmatprep.subr.bf16.mxu0 0
      %641 = vmatpush1.bf16.msra.mxu0 0
      %642 = vmatprep.subr.bf16.mxu0 0
      %643 = vmatpush1.bf16.msra.mxu0 0
      %644 = vmatprep.subr.bf16.mxu0 0
      %645 = vmatpush1.bf16.msra.mxu0 0
      %646 = vmatprep.subr.bf16.mxu0 0
      %647 = vmatpush1.bf16.msra.mxu0 0
      %648 = vmatprep.subr.bf16.mxu0 0
      %649 = vmatpush1.bf16.msra.mxu0 0
      %650 = vmatprep.subr.bf16.mxu0 0
      %651 = vmatpush1.bf16.msra.mxu0 0
      %652 = vmatprep.subr.bf16.mxu0 0
      %653 = vmatpush1.bf16.msra.mxu0 0
      %654 = vmatprep.subr.bf16.mxu0 0
      %655 = vmatpush1.bf16.msra.mxu0 0
      %656 = vmatprep.subr.bf16.mxu0 0
      %657 = vmatpush1.bf16.msra.mxu0 0
      %658 = vmatprep.subr.bf16.mxu0 0
      %659 = vmatpush1.bf16.msra.mxu0 0
      %660 = vmatprep.subr.bf16.mxu0 0
      %661 = vmatpush1.bf16.msra.mxu0 0
      %662 = vmatprep.mubr.bf16.mxu0 0
      %663 = vmatmul.mubr.bf16.gmra.mrb[0].mxu0 %v622
      %v664 = vpop.f32.mrb[0].mxu0
      %v665 = vadd.f32 0.0, %v664
      %v666 = vpop.f32.mrb[0].mxu0
      %v667 = vadd.f32 0.0, %v666
      %v668 = vpop.f32.mrb[0].mxu0
      %v669 = vpop.f32.mrb[0].mxu0
      %670 = vdwg.mxu0
      %v671 = vsel %vm398, %v665, 0.0
      %v672 = vsel %vm398, %v667, 0.0
      %v673 = vadd.f32 %v671, %v672
      %674 = vadd.xlane.f32.xlu0 %v673
      %v675 = vpop.xlane.xlu0 %674
      %v676 = vsel %vm398, %v675, 0.0
      %v677 = vrot.slane %v676, 4
      %v678 = vadd.f32 %v676, %v677
      %v679 = vrot.slane %v678, 2
      %v680 = vadd.f32 %v678, %v679
      %v681 = vrot.slane %v680, 1
      %v682 = vadd.f32 %v680, %v681
      %v683 = vmul.f32 %v682, %v411
      %v684 = vsub.f32 %v665, %v683
      %v685 = vsub.f32 %v667, %v683
      %v686 = vmul.f32 %v684, %v684
      %v687 = vmul.f32 %v685, %v685
      %v688 = vsel %vm398, %v686, 0.0
      %v689 = vsel %vm398, %v687, 0.0
      %v690 = vadd.f32 %v688, %v689
      %691 = vadd.xlane.f32.xlu0 %v690
      %v692 = vpop.xlane.xlu0 %691
      %v693 = vsel %vm398, %v692, 0.0
      %v694 = vrot.slane %v693, 4
      %v695 = vadd.f32 %v693, %v694
      %v696 = vrot.slane %v695, 2
      %v697 = vadd.f32 %v695, %v696
      %v698 = vrot.slane %v697, 1
      %v699 = vadd.f32 %v697, %v698
      %v700 = vmul.f32 %v699, %v411
      %v701 = vadd.f32 %v700, 1e-05
      %v702 = vrsqrt.pop %v701
      %v703 = vmul.f32 %v684, %v702
      %v704 = vmul.f32 %v685, %v702
      %v705 = vmax.f32 %v703, 0.0
      %v706 = vmax.f32 %v704, 0.0
      %v707 = vld [vmem:[%s321] sm:$0xf]
      %v708 = vld [vmem:[%s321 + $0x4] sm:$0xf]
      %v709 = vpack.c.bf16 %v705, %v705
      %v710 = vpack.c.bf16 %v706, %v706
      %v713 = vunpack.c.l.b16 %v707
      %v714 = vunpack.c.l.b16 %v708
      %v715 = vpack.c.b16 %v714, %v713
      %v717 = vsel %vm346, %v715, 0
      %v720 = vsel %vm350, %v709, 0
      %v723 = vsel %vm350, %v710, 0
      %725 = vmatprep.subr.bf16.mxu0 %v723
      %726 = vmatpush1.bf16.msra.mxu0 %v720
      %727 = vmatprep.subr.bf16.mxu0 0
      %728 = vmatpush1.bf16.msra.mxu0 0
      %729 = vmatprep.subr.bf16.mxu0 0
      %730 = vmatpush1.bf16.msra.mxu0 0
      %731 = vmatprep.subr.bf16.mxu0 0
      %732 = vmatpush1.bf16.msra.mxu0 0
      %733 = vmatprep.subr.bf16.mxu0 0
      %734 = vmatpush1.bf16.msra.mxu0 0
      %735 = vmatprep.subr.bf16.mxu0 0
      %736 = vmatpush1.bf16.msra.mxu0 0
      %737 = vmatprep.subr.bf16.mxu0 0
      %738 = vmatpush1.bf16.msra.mxu0 0
      %739 = vmatprep.subr.bf16.mxu0 0
      %740 = vmatpush1.bf16.msra.mxu0 0
      %741 = vmatprep.subr.bf16.mxu0 0
      %742 = vmatpush1.bf16.msra.mxu0 0
      %743 = vmatprep.subr.bf16.mxu0 0
      %744 = vmatpush1.bf16.msra.mxu0 0
      %745 = vmatprep.subr.bf16.mxu0 0
      %746 = vmatpush1.bf16.msra.mxu0 0
      %747 = vmatprep.subr.bf16.mxu0 0
      %748 = vmatpush1.bf16.msra.mxu0 0
      %749 = vmatprep.subr.bf16.mxu0 0
      %750 = vmatpush1.bf16.msra.mxu0 0
      %751 = vmatprep.subr.bf16.mxu0 0
      %752 = vmatpush1.bf16.msra.mxu0 0
      %753 = vmatprep.subr.bf16.mxu0 0
      %754 = vmatpush1.bf16.msra.mxu0 0
      %755 = vmatprep.subr.bf16.mxu0 0
      %756 = vmatpush1.bf16.msra.mxu0 0
      %757 = vmatprep.mubr.bf16.mxu0 0
      %758 = vmatmul.mubr.bf16.gmra.mrb[0].mxu0 %v717
      %v759 = vpop.f32.mrb[0].mxu0
      %v760 = vadd.f32 0.0, %v759
      %v761 = vpop.f32.mrb[0].mxu0
      %v762 = vadd.f32 0.0, %v761
      %v763 = vpop.f32.mrb[0].mxu0
      %v764 = vadd.f32 0.0, %v763
      %v765 = vpop.f32.mrb[0].mxu0
      %v766 = vadd.f32 0.0, %v765
      %767 = vdwg.mxu0
      %v768 = vadd.f32 %v760, %v762
      %769 = vadd.xlane.f32.xlu0 %v768
      %v770 = vpop.xlane.xlu0 %769
      %v771 = vadd.f32 %v764, %v766
      %772 = vadd.xlane.f32.xlu0 %v771
      %v773 = vpop.xlane.xlu0 %772
      %v774 = vadd.f32 %v770, %v773
      %v775 = vrot.slane %v774, 4
      %v776 = vadd.f32 %v774, %v775
      %v777 = vrot.slane %v776, 2
      %v778 = vadd.f32 %v776, %v777
      %v779 = vrot.slane %v778, 1
      %v780 = vadd.f32 %v778, %v779
      %v781 = vrcp.pop 4096.0
      %v782 = vmul.f32 %v780, %v781
      %v783 = vsub.f32 %v760, %v782
      %v784 = vsub.f32 %v762, %v782
      %v785 = vsub.f32 %v764, %v782
      %v786 = vsub.f32 %v766, %v782
      %v787 = vmul.f32 %v783, %v783
      %v788 = vmul.f32 %v784, %v784
      %v789 = vmul.f32 %v785, %v785
      %v790 = vmul.f32 %v786, %v786
      %v791 = vadd.f32 %v787, %v788
      %792 = vadd.xlane.f32.xlu0 %v791
      %v793 = vpop.xlane.xlu0 %792
      %v794 = vadd.f32 %v789, %v790
      %795 = vadd.xlane.f32.xlu0 %v794
      %v796 = vpop.xlane.xlu0 %795
      %v797 = vadd.f32 %v793, %v796
      %v798 = vrot.slane %v797, 4
      %v799 = vadd.f32 %v797, %v798
      %v800 = vrot.slane %v799, 2
      %v801 = vadd.f32 %v799, %v800
      %v802 = vrot.slane %v801, 1
      %v803 = vadd.f32 %v801, %v802
      %v804 = vmul.f32 %v803, %v781
      %v805 = vadd.f32 %v804, 1e-05
      %v806 = vrsqrt.pop %v805
      %v807 = vmul.f32 %v783, %v806
      %v808 = vmul.f32 %v784, %v806
      %v809 = vmul.f32 %v785, %v806
      %v810 = vmul.f32 %v786, %v806
      %v811 = vld [vmem:[%s326] sm:$0xf]
      %v812 = vld [vmem:[%s326 + $0x4] sm:$0xf]
      %v815 = vunpack.c.l.b16 %v811
      %v816 = vunpack.c.l.b16 %v812
      %v817 = vpack.c.b16 %v816, %v815
      %v819 = vsel %vm346, %v817, 0
      %821 = vmatprep.subr.bf16.mxu0 %v355
      %822 = vmatpush1.bf16.msra.mxu0 %v352
      %823 = vmatprep.subr.bf16.mxu0 0
      %824 = vmatpush1.bf16.msra.mxu0 0
      %825 = vmatprep.subr.bf16.mxu0 0
      %826 = vmatpush1.bf16.msra.mxu0 0
      %827 = vmatprep.subr.bf16.mxu0 0
      %828 = vmatpush1.bf16.msra.mxu0 0
      %829 = vmatprep.subr.bf16.mxu0 0
      %830 = vmatpush1.bf16.msra.mxu0 0
      %831 = vmatprep.subr.bf16.mxu0 0
      %832 = vmatpush1.bf16.msra.mxu0 0
      %833 = vmatprep.subr.bf16.mxu0 0
      %834 = vmatpush1.bf16.msra.mxu0 0
      %835 = vmatprep.subr.bf16.mxu0 0
      %836 = vmatpush1.bf16.msra.mxu0 0
      %837 = vmatprep.subr.bf16.mxu0 0
      %838 = vmatpush1.bf16.msra.mxu0 0
      %839 = vmatprep.subr.bf16.mxu0 0
      %840 = vmatpush1.bf16.msra.mxu0 0
      %841 = vmatprep.subr.bf16.mxu0 0
      %842 = vmatpush1.bf16.msra.mxu0 0
      %843 = vmatprep.subr.bf16.mxu0 0
      %844 = vmatpush1.bf16.msra.mxu0 0
      %845 = vmatprep.subr.bf16.mxu0 0
      %846 = vmatpush1.bf16.msra.mxu0 0
      %847 = vmatprep.subr.bf16.mxu0 0
      %848 = vmatpush1.bf16.msra.mxu0 0
      %849 = vmatprep.subr.bf16.mxu0 0
      %850 = vmatpush1.bf16.msra.mxu0 0
      %851 = vmatprep.subr.bf16.mxu0 0
      %852 = vmatpush1.bf16.msra.mxu0 0
      %853 = vmatprep.mubr.bf16.mxu0 0
      %854 = vmatmul.mubr.bf16.gmra.mrb[0].mxu0 %v819
      %v855 = vpop.f32.mrb[0].mxu0
      %v856 = vadd.f32 0.0, %v855
      %v857 = vpop.f32.mrb[0].mxu0
      %v858 = vadd.f32 0.0, %v857
      %v859 = vpop.f32.mrb[0].mxu0
      %v860 = vadd.f32 0.0, %v859
      %v861 = vpop.f32.mrb[0].mxu0
      %v862 = vadd.f32 0.0, %v861
      %863 = vdwg.mxu0
      %v864 = vadd.f32 %v856, %v858
      %865 = vadd.xlane.f32.xlu0 %v864
      %v866 = vpop.xlane.xlu0 %865
      %v867 = vadd.f32 %v860, %v862
      %868 = vadd.xlane.f32.xlu0 %v867
      %v869 = vpop.xlane.xlu0 %868
      %v870 = vadd.f32 %v866, %v869
      %v871 = vrot.slane %v870, 4
      %v872 = vadd.f32 %v870, %v871
      %v873 = vrot.slane %v872, 2
      %v874 = vadd.f32 %v872, %v873
      %v875 = vrot.slane %v874, 1
      %v876 = vadd.f32 %v874, %v875
      %v877 = vmul.f32 %v876, %v781
      %v878 = vsub.f32 %v856, %v877
      %v879 = vsub.f32 %v858, %v877
      %v880 = vsub.f32 %v860, %v877
      %v881 = vsub.f32 %v862, %v877
      %v882 = vmul.f32 %v878, %v878
      %v883 = vmul.f32 %v879, %v879
      %v884 = vmul.f32 %v880, %v880
      %v885 = vmul.f32 %v881, %v881
      %v886 = vadd.f32 %v882, %v883
      %887 = vadd.xlane.f32.xlu0 %v886
      %v888 = vpop.xlane.xlu0 %887
      %v889 = vadd.f32 %v884, %v885
      %890 = vadd.xlane.f32.xlu0 %v889
      %v891 = vpop.xlane.xlu0 %890
      %v892 = vadd.f32 %v888, %v891
      %v893 = vrot.slane %v892, 4
      %v894 = vadd.f32 %v892, %v893
      %v895 = vrot.slane %v894, 2
      %v896 = vadd.f32 %v894, %v895
      %v897 = vrot.slane %v896, 1
      %v898 = vadd.f32 %v896, %v897
      %v899 = vmul.f32 %v898, %v781
      %v900 = vadd.f32 %v899, 1e-05
      %v901 = vrsqrt.pop %v900
      %v902 = vmul.f32 %v878, %v901
      %v903 = vmul.f32 %v879, %v901
      %v904 = vmul.f32 %v880, %v901
      %v905 = vmul.f32 %v881, %v901
      %v906 = vadd.f32 %v807, %v902
      %v907 = vadd.f32 %v808, %v903
      %v908 = vadd.f32 %v809, %v904
      %v909 = vadd.f32 %v810, %v905
      %v910 = vmax.f32 %v906, 0.0
      %v911 = vmax.f32 %v907, 0.0
      %v912 = vmax.f32 %v908, 0.0
      %v913 = vmax.f32 %v909, 0.0
      %914 = vst [vmem:[%s336] sm:$0xff] %v910
      %915 = vst [vmem:[%s336 + $0x8] sm:$0xff] %v911
      %916 = vst [vmem:[%s336 + $0x10] sm:$0xff] %v912
      %917 = vst [vmem:[%s336 + $0x18] sm:$0xff] %v913
      %s918 = smul.u32 2, %s20
      %p919 = scmp.lt.s32.totalorder %s21, 1
      %s920 = scalar_select %p919, %s21, 1
      %p921 = scmp.lt.s32.totalorder %s918, 1
      %s922 = scalar_select %p921, %s918, 1
      %s923 = smul.addr %s922, 2
      %s924 = smul.addr %s920, 4
      %s925 = sadd.s32 %s923, %s924
      %s926 = smul.addr %s925, 8
      %s927 = scalar_lea.vmem %s5, %s926
      // Predicated region
      $region41: #{bottleneck_forward.1} parent=39 // pred_check
        %p928 = pneg %p180
      $region42: #{bottleneck_forward.1} parent=39 // pred_check_branch
        %930 = sbr.rel (%p928) target = $region44
      $region43: #{bottleneck_forward.1} parent=39 // pred_region
        %s931 = smul.u32 2, %s20
      $region44: #{bottleneck_forward.1} parent=39 // pred_fallthru
        _
    $region40: #{bottleneck_forward.1} parent=5 // pred_fallthru
      _
    %p932 = scmp.le.s32.totalorder 2, %s11
    // Predicated region
    $region45: #{bottleneck_forward.1} parent=5 // pred_check
      %p933 = pneg %p932
    $region46: #{bottleneck_forward.1} parent=5 // pred_check_branch
      %935 = sbr.rel (%p933) target = $region48
    $region47: #{bottleneck_forward.1} parent=5 // pred_region
      %s936 = ssub.s32 %s11, 2
      // Predicated region
      $region49: #{bottleneck_forward.1} parent=47 // pred_check
        %p937 = pneg %p186
      $region50: #{bottleneck_forward.1} parent=47 // pred_check_branch
        %939 = sbr.rel (%p937) target = $region52
      $region51: #{bottleneck_forward.1} parent=47 // pred_region
        %s940 = smul.u32 2, %s22
        %p941 = scmp.lt.s32.totalorder %s23, 1
        %s942 = scalar_select %p941, %s23, 1
        %p943 = scmp.lt.s32.totalorder %s940, 1
        %s944 = scalar_select %p943, %s940, 1
        %s945 = smul.addr %s944, 2
        %s946 = smul.addr %s942, 4
        %s947 = sadd.s32 %s945, %s946
        %s948 = smul.addr %s947, 8
        %s949 = scalar_lea.vmem %s5, %s948
      $region52: #{bottleneck_forward.1} parent=47 // pred_fallthru
        _
    $region48: #{bottleneck_forward.1} parent=5 // pred_fallthru
      _
  $region6: #{bottleneck_forward.1} parent=0 // loop_footer
    %s15 = sadd.s32 1, %s11
  $region7: #{bottleneck_forward.1} parent=0 // loop_footer_branch
    %10 = sbr.rel target = $region3
  $region8: #{bottleneck_forward.1} parent=0 // loop_exit
    _

</llo_original>
